<compile_context>
chip_gen: v7x
topology: tpu7x:2x2x1
jax: 0.10.0
libtpu: 0.0.40
codegen_flags: <defaults>
</compile_context>

<pallas_src>
import math

import jax
import jax.numpy as jnp
from jax.experimental import pallas as pl
from jax.experimental.pallas import tpu as pltpu


def _make_kernel(V, D, pack, W, rows_per_tile):
    """Build the row-tile kernel for fixed (V, D, pack, W, rows_per_tile)."""

    def kernel(idx_ref, table_ref, pe_ref, out_ref):
        # idx_ref:   (T, pack) int32  narrow index columns for this tile
        # table_ref: (V, W)    f32    lane-packed embedding table (resident)
        # pe_ref:    (T, W)    f32    one tile of packed positional rows (resident)
        # out_ref:   (T, W)    f32
        T = rows_per_tile
        idx_tile = idx_ref[...]                                    # (T, pack)

        # Expand narrow idx to lane-dense (T, W).  Lane group g (lanes
        # [g*D, (g+1)*D)) takes index column g; groups are consecutive, so an
        # ascending chain of `lane >= g*D` selects suffices (VPU compares +
        # selects only; no integer div).  All broadcasts hoisted / minimal.
        idxe = jnp.broadcast_to(idx_tile[:, 0:1], (T, W))
        if pack > 1:
            lane = jax.lax.broadcasted_iota(jnp.int32, (T, W), 1)
            for g in range(1, pack):
                idxe = jnp.where(
                    lane >= g * D,
                    jnp.broadcast_to(idx_tile[:, g:g + 1], (T, W)),
                    idxe,
                )
        # TODO(synk): nn.Embedding raises on out-of-range ids; we clamp instead.
        idxe = jnp.clip(idxe, 0, V - 1)

        # V-way VPU select gather from the resident lane-packed table.
        # Initialize from row 0, select over v = 1..V-1 (one fewer select,
        # no zero-fill; the idx mask is already full-shape so each iteration
        # is a plain compare + select).
        tbl = table_ref[...]                                       # (V, W)
        emb = jnp.broadcast_to(tbl[0][None, :], (T, W))
        for v in range(1, V):
            emb = jnp.where(idxe == v, tbl[v][None, :], emb)

        # Positional add on the VPU.  Dropout (p=0.1) is identity in eval mode.
        out_ref[...] = emb + pe_ref[...]

    return kernel


def _choose_tiling(rp, lp, max_rows=2048):
    """Pick (rows_per_tile, padded_total_rows) for the packed-row layout.

    rows_per_tile is a multiple of lcm(8, lp) so every tile starts on a
    position-period boundary (the resident pe tile lines up) and satisfies the
    sublane (multiple-of-8) constraint.  padded_total_rows = n_tiles *
    rows_per_tile with n_tiles >= 2 so the 'parallel' grid axis can be
    megacore-sharded on v7x.
    """
    base = math.lcm(8, lp)
    per_tile_cap = base * max(1, max_rows // base)
    n_tiles = max(2, -(-rp // per_tile_cap))                 # ceil, >= 2
    rows_per_tile = -(-rp // (n_tiles * base)) * base        # ceil to mult of base
    rows_per_tile = max(rows_per_tile, base)
    return rows_per_tile, n_tiles * rows_per_tile


def state_pos_embedding(x_state, emb_table, pe_table):
    """x_state: (B, L, 1) int; emb_table: (V, D) f32; pe_table: (L, D) f32."""
    B, L, _ = x_state.shape
    V, D = emb_table.shape

    # Lane packing: fold `pack` consecutive rows into one W = pack*D lane row.
    pack = 128 // D if (D <= 128 and 128 % D == 0) else 1
    if pack > 1 and L % pack != 0:
        pack = 1                               # keep packed rows inside one (b, L) run
    W = D * pack
    Lp = L // pack
    R = B * L
    Rp = R // pack

    rows_per_tile, rp_pad = _choose_tiling(Rp, Lp)
    n_tiles = rp_pad // rows_per_tile

    # Narrow index stream on HBM: (Rp, pack) int32, padded rows are zeros.
    idx = x_state.reshape(R).astype(jnp.int32).reshape(Rp, pack)
    idx = jnp.pad(idx, ((0, rp_pad - Rp), (0, 0)))

    # Lane-packed embedding table (tiny, resident).
    table_packed = jnp.tile(emb_table.astype(jnp.float32), (1, pack))   # (V, W)

    # One tile's worth of packed positional rows, fetched once and resident.
    # Tiles start on multiples of Lp (guaranteed by _choose_tiling), so the
    # same periodic tile is valid for every grid step.
    pe_packed = pe_table.astype(jnp.float32).reshape(Lp, W)             # (Lp, W)
    pe_tile = jnp.tile(pe_packed, (rows_per_tile // Lp, 1))             # (T, W)

    kernel = _make_kernel(V=V, D=D, pack=pack, W=W, rows_per_tile=rows_per_tile)

    # Advisory: memory-bound; honest byte count after removing the pe replication.
    bytes_accessed = (rp_pad * pack * 4) + (V * W * 4) + (rows_per_tile * W * 4) \
        + (rp_pad * W * 4)
    cost = pl.CostEstimate(
        flops=rp_pad * W * (V + pack + 1), transcendentals=0,
        bytes_accessed=bytes_accessed,
    )

    out_padded = pl.pallas_call(
        kernel,
        out_shape=jax.ShapeDtypeStruct((rp_pad, W), jnp.float32),
        grid_spec=pltpu.PrefetchScalarGridSpec(
            num_scalar_prefetch=0,
            grid=(n_tiles,),
            in_specs=[
                pl.BlockSpec((rows_per_tile, pack), lambda t: (t, 0)),  # idx tile
                pl.BlockSpec((V, W), lambda t: (0, 0)),                 # table, once
                pl.BlockSpec((rows_per_tile, W), lambda t: (0, 0)),     # pe, once
            ],
            out_specs=pl.BlockSpec((rows_per_tile, W), lambda t: (t, 0)),
        ),
        compiler_params=pltpu.CompilerParams(
            dimension_semantics=("parallel",),       # megacore sharding on v7x
            vmem_limit_bytes=32 * 1024 * 1024,
        ),
        cost_estimate=cost,
    )(idx, table_packed, pe_tile)

    # Drop padded rows; (Rp, W) -> (B, L, D) is a pure row-major relabel.
    # TODO(synk): training-mode dropout (p=0.1) not applied; matches eval mode.
    return out_padded[:Rp].reshape(B, L, D)


def make_positional_embedding(seq_len, d_model):
    """Matches the PyTorch PositionalEmbedding buffer pe[:, :seq_len]."""
    position = jnp.arange(seq_len, dtype=jnp.float32)[:, None]          # (L, 1)
    div_term = jnp.exp(
        jnp.arange(0, d_model, 2, dtype=jnp.float32)
        * (-math.log(10000.0) / d_model)
    )                                                                   # (D/2,)
    pe = jnp.zeros((seq_len, d_model), dtype=jnp.float32)
    pe = pe.at[:, 0::2].set(jnp.sin(position * div_term))
    pe = pe.at[:, 1::2].set(jnp.cos(position * div_term))
    return pe


def reference_forward(x_state, emb_table, pe_table):
    """Plain-JAX reference of the PyTorch forward (eval-mode dropout)."""
    emb = jnp.take(emb_table, x_state[..., 0], axis=0)     # (B, L, D)
    return emb + pe_table[None, :, :]


if __name__ == "__main__":
    # Small shapes consistent with the module.
    num_grps = 4
    d_model = 32
    B, L = 2, 8

    key = jax.random.PRNGKey(0)
    k_table, k_state, k_x, k_mark = jax.random.split(key, 4)

    # nn.Embedding default init: N(0, 1), shape (num_grps + 1, d_model).
    emb_table = jax.random.normal(k_table, (num_grps + 1, d_model), jnp.float32)
    pe_table = make_positional_embedding(L, d_model)

    # Inputs: x_state holds group ids in [0, num_grps]; x, x_mark are unused
    # by the PyTorch forward but constructed for interface fidelity.
    x_state = jax.random.randint(k_state, (B, L, 1), 0, num_grps + 1, jnp.int32)
    x = jax.random.normal(k_x, (B, L, d_model), jnp.float32)
    x_mark = jax.random.normal(k_mark, (B, L, 4), jnp.float32)

    out = state_pos_embedding(x_state, emb_table, pe_table)
    out = jax.block_until_ready(out)

    ref = reference_forward(x_state, emb_table, pe_table)
    assert out.shape == (B, L, d_model)
    assert jnp.allclose(out, ref, atol=1e-5, rtol=1e-5)

    print("KERNEL_OK")
</pallas_src>

<mosaic_0001>
module attributes {stable_mosaic.version = 11 : i64} {
  func.func @kernel(%arg0: i32, %arg1: memref<8x4xi32, #tpu.memory_space<vmem>>, %arg2: memref<5x128xf32, #tpu.memory_space<vmem>>, %arg3: memref<8x128xf32, #tpu.memory_space<vmem>>, %arg4: memref<8x128xf32, #tpu.memory_space<vmem>>) attributes {dimension_semantics = [#tpu.dimension_semantics<parallel>], iteration_bounds = array<i64: 2>, scalar_prefetch = 0 : i64, scratch_operands = 0 : i64, tpu.core_type = #tpu.core_type<tc>, window_params = [{transform_indices = @transform_0, window_bounds = array<i64: 8, 4>}, {pipeline_mode = #tpu.pipeline_mode<synchronous>, transform_indices = @transform_1, window_bounds = array<i64: 5, 128>}, {pipeline_mode = #tpu.pipeline_mode<synchronous>, transform_indices = @transform_2, window_bounds = array<i64: 8, 128>}, {transform_indices = @transform_3, window_bounds = array<i64: 8, 128>}]} {
    %c0 = arith.constant 0 : index
    %c0_0 = arith.constant 0 : index
    %0 = vector.load %arg1[%c0, %c0_0] : memref<8x4xi32, #tpu.memory_space<vmem>>, vector<8x4xi32>
    %1 = vector.extract_strided_slice %0 {offsets = [0, 0], sizes = [8, 1], strides = [1, 1]} : vector<8x4xi32> to vector<8x1xi32>
    %2 = vector.shape_cast %1 : vector<8x1xi32> to vector<8x1xi32>
    %3 = vector.broadcast %2 : vector<8x1xi32> to vector<8x128xi32>
    %4 = tpu.iota {dimensions = array<i32: 1>} : vector<8x128xi32>
    %c32_i32 = arith.constant 32 : i32
    %5 = vector.broadcast %c32_i32 : i32 to vector<8x128xi32>
    %6 = arith.cmpi sge, %4, %5 : vector<8x128xi32>
    %7 = vector.extract_strided_slice %0 {offsets = [0, 1], sizes = [8, 1], strides = [1, 1]} : vector<8x4xi32> to vector<8x1xi32>
    %8 = vector.shape_cast %7 : vector<8x1xi32> to vector<8x1xi32>
    %9 = vector.broadcast %8 : vector<8x1xi32> to vector<8x128xi32>
    %10 = arith.select %6, %9, %3 : vector<8x128xi1>, vector<8x128xi32>
    %c64_i32 = arith.constant 64 : i32
    %11 = vector.broadcast %c64_i32 : i32 to vector<8x128xi32>
    %12 = arith.cmpi sge, %4, %11 : vector<8x128xi32>
    %13 = vector.extract_strided_slice %0 {offsets = [0, 2], sizes = [8, 1], strides = [1, 1]} : vector<8x4xi32> to vector<8x1xi32>
    %14 = vector.shape_cast %13 : vector<8x1xi32> to vector<8x1xi32>
    %15 = vector.broadcast %14 : vector<8x1xi32> to vector<8x128xi32>
    %16 = arith.select %12, %15, %10 : vector<8x128xi1>, vector<8x128xi32>
    %c96_i32 = arith.constant 96 : i32
    %17 = vector.broadcast %c96_i32 : i32 to vector<8x128xi32>
    %18 = arith.cmpi sge, %4, %17 : vector<8x128xi32>
    %19 = vector.extract_strided_slice %0 {offsets = [0, 3], sizes = [8, 1], strides = [1, 1]} : vector<8x4xi32> to vector<8x1xi32>
    %20 = vector.shape_cast %19 : vector<8x1xi32> to vector<8x1xi32>
    %21 = vector.broadcast %20 : vector<8x1xi32> to vector<8x128xi32>
    %22 = arith.select %18, %21, %16 : vector<8x128xi1>, vector<8x128xi32>
    %c0_i32 = arith.constant 0 : i32
    %c4_i32 = arith.constant 4 : i32
    %23 = vector.broadcast %c0_i32 : i32 to vector<8x128xi32>
    %24 = arith.maxsi %23, %22 : vector<8x128xi32>
    %25 = vector.broadcast %c4_i32 : i32 to vector<8x128xi32>
    %26 = arith.minsi %25, %24 : vector<8x128xi32>
    %c0_1 = arith.constant 0 : index
    %c0_2 = arith.constant 0 : index
    %27 = vector.load %arg2[%c0_1, %c0_2] : memref<5x128xf32, #tpu.memory_space<vmem>>, vector<5x128xf32>
    %28 = vector.extract_strided_slice %27 {offsets = [0, 0], sizes = [1, 128], strides = [1, 1]} : vector<5x128xf32> to vector<1x128xf32>
    %29 = vector.shape_cast %28 : vector<1x128xf32> to vector<128xf32>
    %30 = vector.shape_cast %29 : vector<128xf32> to vector<1x128xf32>
    %31 = vector.shape_cast %30 : vector<1x128xf32> to vector<1x128xf32>
    %32 = vector.broadcast %31 : vector<1x128xf32> to vector<8x128xf32>
    %c1_i32 = arith.constant 1 : i32
    %33 = vector.broadcast %c1_i32 : i32 to vector<8x128xi32>
    %34 = arith.cmpi eq, %26, %33 : vector<8x128xi32>
    %35 = vector.extract_strided_slice %27 {offsets = [1, 0], sizes = [1, 128], strides = [1, 1]} : vector<5x128xf32> to vector<1x128xf32>
    %36 = vector.shape_cast %35 : vector<1x128xf32> to vector<128xf32>
    %37 = vector.shape_cast %36 : vector<128xf32> to vector<1x128xf32>
    %38 = vector.shape_cast %37 : vector<1x128xf32> to vector<1x128xf32>
    %39 = vector.broadcast %38 : vector<1x128xf32> to vector<8x128xf32>
    %40 = arith.select %34, %39, %32 : vector<8x128xi1>, vector<8x128xf32>
    %c2_i32 = arith.constant 2 : i32
    %41 = vector.broadcast %c2_i32 : i32 to vector<8x128xi32>
    %42 = arith.cmpi eq, %26, %41 : vector<8x128xi32>
    %43 = vector.extract_strided_slice %27 {offsets = [2, 0], sizes = [1, 128], strides = [1, 1]} : vector<5x128xf32> to vector<1x128xf32>
    %44 = vector.shape_cast %43 : vector<1x128xf32> to vector<128xf32>
    %45 = vector.shape_cast %44 : vector<128xf32> to vector<1x128xf32>
    %46 = vector.shape_cast %45 : vector<1x128xf32> to vector<1x128xf32>
    %47 = vector.broadcast %46 : vector<1x128xf32> to vector<8x128xf32>
    %48 = arith.select %42, %47, %40 : vector<8x128xi1>, vector<8x128xf32>
    %c3_i32 = arith.constant 3 : i32
    %49 = vector.broadcast %c3_i32 : i32 to vector<8x128xi32>
    %50 = arith.cmpi eq, %26, %49 : vector<8x128xi32>
    %51 = vector.extract_strided_slice %27 {offsets = [3, 0], sizes = [1, 128], strides = [1, 1]} : vector<5x128xf32> to vector<1x128xf32>
    %52 = vector.shape_cast %51 : vector<1x128xf32> to vector<128xf32>
    %53 = vector.shape_cast %52 : vector<128xf32> to vector<1x128xf32>
    %54 = vector.shape_cast %53 : vector<1x128xf32> to vector<1x128xf32>
    %55 = vector.broadcast %54 : vector<1x128xf32> to vector<8x128xf32>
    %56 = arith.select %50, %55, %48 : vector<8x128xi1>, vector<8x128xf32>
    %c4_i32_3 = arith.constant 4 : i32
    %57 = vector.broadcast %c4_i32_3 : i32 to vector<8x128xi32>
    %58 = arith.cmpi eq, %26, %57 : vector<8x128xi32>
    %59 = vector.extract_strided_slice %27 {offsets = [4, 0], sizes = [1, 128], strides = [1, 1]} : vector<5x128xf32> to vector<1x128xf32>
    %60 = vector.shape_cast %59 : vector<1x128xf32> to vector<128xf32>
    %61 = vector.shape_cast %60 : vector<128xf32> to vector<1x128xf32>
    %62 = vector.shape_cast %61 : vector<1x128xf32> to vector<1x128xf32>
    %63 = vector.broadcast %62 : vector<1x128xf32> to vector<8x128xf32>
    %64 = arith.select %58, %63, %56 : vector<8x128xi1>, vector<8x128xf32>
    %c0_4 = arith.constant 0 : index
    %c0_5 = arith.constant 0 : index
    %65 = vector.load %arg3[%c0_4, %c0_5] : memref<8x128xf32, #tpu.memory_space<vmem>>, vector<8x128xf32>
    %66 = arith.addf %64, %65 : vector<8x128xf32>
    %c0_6 = arith.constant 0 : index
    %c0_7 = arith.constant 0 : index
    %67 = vector.load %arg4[%c0_6, %c0_7] : memref<8x128xf32, #tpu.memory_space<vmem>>, vector<8x128xf32>
    tpu.vector_store %arg4[%c0_6, %c0_7], %66 {strides = array<i32>} : memref<8x128xf32, #tpu.memory_space<vmem>>, vector<8x128xf32>,
    return
  }
  func.func @transform_0(%arg0: i32) -> (i32, i32) {
    %c0_i32 = arith.constant 0 : i32
    %c0_i32_0 = arith.constant 0 : i32
    return %arg0, %c0_i32 : i32, i32
  }
  func.func @transform_1(%arg0: i32) -> (i32, i32) {
    %c0_i32 = arith.constant 0 : i32
    %c0_i32_0 = arith.constant 0 : i32
    %c0_i32_1 = arith.constant 0 : i32
    return %c0_i32, %c0_i32_0 : i32, i32
  }
  func.func @transform_2(%arg0: i32) -> (i32, i32) {
    %c0_i32 = arith.constant 0 : i32
    %c0_i32_0 = arith.constant 0 : i32
    %c0_i32_1 = arith.constant 0 : i32
    return %c0_i32, %c0_i32_0 : i32, i32
  }
  func.func @transform_3(%arg0: i32) -> (i32, i32) {
    %c0_i32 = arith.constant 0 : i32
    %c0_i32_0 = arith.constant 0 : i32
    return %arg0, %c0_i32 : i32, i32
  }
}

</mosaic_0001>

<llo_original>
// kernel: tpu_custom_call.1
$region0: #{tpu_custom_call.1}
  #allocation0 [shape = 'u32[]', space=smem, size = 0x4, offset = 0x4, fixed_abs, tag = 'smem constant byte address 0x4 - core index']
  #allocation1 [shape = 'u32[144,128]{1,0:T(1,128)}', space=vmem, size = 0x12000, scoped, tag = 'internal scratch']
  %s0 = inlined_call_operand.vmem [shape: s32[16,4], index: 0, kind: input, shape index: {}]
  %s1 = inlined_call_operand.vmem [shape: f32[5,128], index: 1, kind: input, shape index: {}]
  %s2 = inlined_call_operand.vmem [shape: f32[8,128], index: 2, kind: input, shape index: {}]
  %s3 = inlined_call_operand.hbm [shape: f32[16,128], index: 3, kind: output, shape index: {}]
  %s4 = sld [smem:[#allocation0]]
  $region45: #{tpu_custom_call.1} parent=0
    _
  %s6 = ssub.s32 1, %s4
  %s7 = scalar_select 0, %s6, %s4
  $region1: #{tpu_custom_call.1} parent=0
    #allocation2 [shape = 'u8[8192]{0}', space=vmem, size = 0x2000, scoped, tag = 'output window, operand 0']
    #allocation3 [shape = 's32[2]{0}', space=sflag, size = 0x8, scoped, tag = 'scoped memory for tpu_custom_call.1']
    %8 = vsyncpa [#allocation3], 0
    %s9 = scalar_lea.sflag [#allocation3], 1
    %10 = vsyncpa %s9, 0
    loop: start=0, step=1, limit=4
    $region2: #{tpu_custom_call.1} parent=1 // loop_pre_header
      _
    $region3: #{tpu_custom_call.1} parent=1 // loop_header
      %s12 = sphi 0, %s16
      %p13 = scmp.ge.s32.totalorder %s12, 4
      %s22 = sphi 0, %s24
      %s25 = sphi 0, %s22
      %s26 = sphi 0, %s25
      %s42 = sphi 0, %s26
      %s46 = sphi 0, %s46
      %s48 = sphi 0, %s46
      %s49 = sphi 0, %s48
      %s63 = sphi 0, %s49
      %s67 = sphi 0, %s67
      %s69 = sphi 0, %s67
      %s70 = sphi 0, %s69
      %s84 = sphi 0, %s70
      %s90 = sphi 0, %s92
      %s93 = sphi 0, %s90
      %s94 = sphi 0, %s93
      %s110 = sphi 0, %s94
    $region4: #{tpu_custom_call.1} parent=1 // loop_header_branch
      %15 = sbr.rel (%p13) target = $region8
    $region5: #{tpu_custom_call.1} parent=1 // loop_body
      %s17 = ssub.s32 %s12, 1
      %s18 = ssub.s32 %s12, 2
      %s19 = sadd.s32 %s12, 1
      %s20 = ssub.s32 %s12, %s19
      %p21 = scmp.eq.s32.totalorder %s20, 0
      %s23 = sadd.s32 %s22, 1
      %s24 = scalar_select %p21, %s22, %s23
      %p27 = pneg %p21
      %p28 = scmp.eq.s32.totalorder %s12, 1
      %p29 = por %p27, %p28
      %p30 = scmp.ne.s32.totalorder %s22, %s25
      %p31 = scmp.eq.s32.totalorder %s12, 0
      %p32 = por %p30, %p31
      %p33 = scmp.ne.s32.totalorder %s22, %s25
      %p34 = scmp.eq.s32.totalorder %s17, 1
      %p35 = por %p33, %p34
      %p36 = scmp.ne.s32.totalorder %s25, %s26
      %p37 = scmp.eq.s32.totalorder %s17, 0
      %p38 = por %p36, %p37
      %p39 = scmp.ne.s32.totalorder %s25, %s26
      %p40 = scmp.eq.s32.totalorder %s18, 1
      %p41 = por %p39, %p40
      %p43 = scmp.ne.s32.totalorder %s26, %s42
      %p44 = scmp.eq.s32.totalorder %s18, 0
      %p45 = por %p43, %p44
      %s47 = sadd.s32 %s46, 1
      %p50 = scmp.eq.s32.totalorder %s12, 1
      %p51 = scmp.ne.s32.totalorder %s46, %s48
      %p52 = scmp.eq.s32.totalorder %s12, 0
      %p53 = por %p51, %p52
      %p54 = scmp.ne.s32.totalorder %s46, %s48
      %p55 = scmp.eq.s32.totalorder %s17, 1
      %p56 = por %p54, %p55
      %p57 = scmp.ne.s32.totalorder %s48, %s49
      %p58 = scmp.eq.s32.totalorder %s17, 0
      %p59 = por %p57, %p58
      %p60 = scmp.ne.s32.totalorder %s48, %s49
      %p61 = scmp.eq.s32.totalorder %s18, 1
      %p62 = por %p60, %p61
      %p64 = scmp.ne.s32.totalorder %s49, %s63
      %p65 = scmp.eq.s32.totalorder %s18, 0
      %p66 = por %p64, %p65
      %s68 = sadd.s32 %s67, 1
      %p71 = scmp.eq.s32.totalorder %s12, 1
      %p72 = scmp.ne.s32.totalorder %s67, %s69
      %p73 = scmp.eq.s32.totalorder %s12, 0
      %p74 = por %p72, %p73
      %p75 = scmp.ne.s32.totalorder %s67, %s69
      %p76 = scmp.eq.s32.totalorder %s17, 1
      %p77 = por %p75, %p76
      %p78 = scmp.ne.s32.totalorder %s69, %s70
      %p79 = scmp.eq.s32.totalorder %s17, 0
      %p80 = por %p78, %p79
      %p81 = scmp.ne.s32.totalorder %s69, %s70
      %p82 = scmp.eq.s32.totalorder %s18, 1
      %p83 = por %p81, %p82
      %p85 = scmp.ne.s32.totalorder %s70, %s84
      %p86 = scmp.eq.s32.totalorder %s18, 0
      %p87 = por %p85, %p86
      %s88 = ssub.s32 %s12, %s19
      %p89 = scmp.eq.s32.totalorder %s88, 0
      %s91 = sadd.s32 %s90, 1
      %s92 = scalar_select %p89, %s90, %s91
      %p95 = pneg %p89
      %p96 = scmp.eq.s32.totalorder %s12, 1
      %p97 = por %p95, %p96
      %p98 = scmp.ne.s32.totalorder %s90, %s93
      %p99 = scmp.eq.s32.totalorder %s12, 0
      %p100 = por %p98, %p99
      %p101 = scmp.ne.s32.totalorder %s90, %s93
      %p102 = scmp.eq.s32.totalorder %s17, 1
      %p103 = por %p101, %p102
      %p104 = scmp.ne.s32.totalorder %s93, %s94
      %p105 = scmp.eq.s32.totalorder %s17, 0
      %p106 = por %p104, %p105
      %p107 = scmp.ne.s32.totalorder %s93, %s94
      %p108 = scmp.eq.s32.totalorder %s18, 1
      %p109 = por %p107, %p108
      %p111 = scmp.ne.s32.totalorder %s94, %s110
      %p112 = scmp.eq.s32.totalorder %s18, 0
      %p113 = por %p111, %p112
      %p114 = scmp.le.s32.totalorder 1, %s12
      %p115 = scmp.lt.s32.totalorder %s12, 3
      %p116 = pnand %p114, %p115
      %p117 = pneg %p116
      // Predicated region
      $region9: #{tpu_custom_call.1} parent=5 // pred_check
        _
      $region10: #{tpu_custom_call.1} parent=5 // pred_check_branch
        %119 = sbr.rel (%p116) target = $region12
      $region11: #{tpu_custom_call.1} parent=5 // pred_region
        %s120 = ssub.s32 %s12, 1
        // Predicated region
        $region13: #{tpu_custom_call.1} parent=11 // pred_check
          %p121 = pneg %p59
        $region14: #{tpu_custom_call.1} parent=11 // pred_check_branch
          %123 = sbr.rel (%p121) target = $region16
        $region15: #{tpu_custom_call.1} parent=11 // pred_region
          _
        $region16: #{tpu_custom_call.1} parent=11 // pred_fallthru
          _
        // Predicated region
        $region17: #{tpu_custom_call.1} parent=11 // pred_check
          %p124 = pneg %p80
        $region18: #{tpu_custom_call.1} parent=11 // pred_check_branch
          %126 = sbr.rel (%p124) target = $region20
        $region19: #{tpu_custom_call.1} parent=11 // pred_region
          _
        $region20: #{tpu_custom_call.1} parent=11 // pred_fallthru
          _
      $region12: #{tpu_custom_call.1} parent=5 // pred_fallthru
        _
      %p127 = scmp.lt.s32.totalorder %s12, 2
      // Predicated region
      $region21: #{tpu_custom_call.1} parent=5 // pred_check
        %p128 = pneg %p127
      $region22: #{tpu_custom_call.1} parent=5 // pred_check_branch
        %130 = sbr.rel (%p128) target = $region24
      $region23: #{tpu_custom_call.1} parent=5 // pred_region
        // Predicated region
        $region25: #{tpu_custom_call.1} parent=23 // pred_check
          %p131 = pneg %p32
        $region26: #{tpu_custom_call.1} parent=23 // pred_check_branch
          %133 = sbr.rel (%p131) target = $region28
        $region27: #{tpu_custom_call.1} parent=23 // pred_region
          %p134 = scmp.lt.s32.totalorder %s12, 1
          %s135 = scalar_select %p134, %s12, 1
          %s136 = smul.addr %s135, 8
          %s137 = scalar_lea.vmem %s0, %s136
        $region28: #{tpu_custom_call.1} parent=23 // pred_fallthru
          _
      $region24: #{tpu_custom_call.1} parent=5 // pred_fallthru
        _
      %p138 = scmp.le.s32.totalorder 1, %s12
      %p139 = scmp.lt.s32.totalorder %s12, 3
      %p140 = pnand %p138, %p139
      %p141 = pneg %p140
      // Predicated region
      $region29: #{tpu_custom_call.1} parent=5 // pred_check
        _
      $region30: #{tpu_custom_call.1} parent=5 // pred_check_branch
        %143 = sbr.rel (%p140) target = $region32
      $region31: #{tpu_custom_call.1} parent=5 // pred_region
        %s144 = ssub.s32 %s12, 1
        %p145 = scmp.lt.s32.totalorder %s17, 1
        %s146 = scalar_select %p145, %s17, 1
        %s147 = smul.addr %s146, 8
        %s148 = scalar_lea.vmem %s0, %s147
        %p149 = pneg %p38
        %p150 = pneg %p35
        %p151 = pneg %p59
        %p152 = pneg %p56
        %p153 = pneg %p80
        %p154 = pneg %p77
        %p155 = pneg %p106
        %p156 = pneg %p103
        %s157 = sand.u32 %s93, 1
        %s158 = scalar_lea.sflag [#allocation3], %s157
        %s159 = sand.u32 %s93, 1
        %s160 = smul.addr %s159, 8
        %s161 = scalar_lea.vmem [#allocation2], %s160
        %p162 = scmp.lt.s32.totalorder %s17, 1
        %s163 = scalar_select %p162, %s17, 1
        %s164 = smul.addr %s163, 8
        %s165 = scalar_lea.vmem %s0, %s164
        %v166 = vld [vmem:[%s165] sm:$0xff]
        %167 = vset.pattern.permute.xlu0 0
        %168 = vperm.xlu0 %167, %v166
        %v169 = vpop.permute.xlu0 %168
        %v170 = vlaneseq
        %v171 = vand.u32 %v170, 127
        %vm172 = vcmp.ge.s32.totalorder %v171, 32
        %173 = vset.pattern.permute.xlu0 1
        %174 = vperm.xlu0 %173, %v166
        %v175 = vpop.permute.xlu0 %174
        %v176 = vsel %vm172, %v175, %v169
        %vm177 = vcmp.ge.s32.totalorder %v171, 64
        %178 = vset.pattern.permute.xlu0 2
        %179 = vperm.xlu0 %178, %v166
        %v180 = vpop.permute.xlu0 %179
        %v181 = vsel %vm177, %v180, %v176
        %vm182 = vcmp.ge.s32.totalorder %v171, 96
        %183 = vset.pattern.permute.xlu0 3
        %184 = vperm.xlu0 %183, %v166
        %v185 = vpop.permute.xlu0 %184
        %v186 = vsel %vm182, %v185, %v181
        %vm187 = vcmp.gt.s32.totalorder %v186, 0
        %v188 = vsel %vm187, %v186, 0
        %vm189 = vcmp.lt.s32.totalorder %v188, 4
        %v190 = vsel %vm189, %v188, 4
        %v191 = vld [vmem:[%s1] sm:$0x1f]
        %v192 = vlaneseq
        %v193 = vshrl.u32 %v192, 7
        %v194 = vsub.s32 0, %v193
        %v195 = vrot.slane %v191, %v194
        %vm196 = vcmp.eq.s32.totalorder %v190, 1
        %v197 = vlaneseq
        %v198 = vshrl.u32 %v197, 7
        %v199 = vsub.s32 1, %v198
        %v200 = vrot.slane %v191, %v199
        %v201 = vsel %vm196, %v200, %v195
        %vm202 = vcmp.eq.s32.totalorder %v190, 2
        %v203 = vlaneseq
        %v204 = vshrl.u32 %v203, 7
        %v205 = vsub.s32 2, %v204
        %v206 = vrot.slane %v191, %v205
        %v207 = vsel %vm202, %v206, %v201
        %vm208 = vcmp.eq.s32.totalorder %v190, 3
        %v209 = vlaneseq
        %v210 = vshrl.u32 %v209, 7
        %v211 = vsub.s32 3, %v210
        %v212 = vrot.slane %v191, %v211
        %v213 = vsel %vm208, %v212, %v207
        %vm214 = vcmp.eq.s32.totalorder %v190, 4
        %v215 = vlaneseq
        %v216 = vshrl.u32 %v215, 7
        %v217 = vsub.s32 4, %v216
        %v218 = vrot.slane %v191, %v217
        %v219 = vsel %vm214, %v218, %v213
        %v220 = vld [vmem:[%s2] sm:$0xff]
        %v221 = vadd.f32 %v219, %v220
        %222 = vst [vmem:[%s161] sm:$0xff] %v221
        %s223 = sand.u32 %s93, 1
        %s224 = scalar_lea.sflag [#allocation3], %s223
        %s225 = sand.u32 %s93, 1
        %s226 = smul.addr %s225, 8
        %s227 = scalar_lea.vmem [#allocation2], %s226
        // Predicated region
        $region33: #{tpu_custom_call.1} parent=31 // pred_check
          %p228 = pneg %p103
        $region34: #{tpu_custom_call.1} parent=31 // pred_check_branch
          %230 = sbr.rel (%p228) target = $region36
        $region35: #{tpu_custom_call.1} parent=31 // pred_region
          %s232 = ssub.s32 128, 128
          %233 = vsyncadd %s224, %s232
          %s234 = smul.addr %s17, 128
          %s235 = scalar_lea.hbm %s3, %s234
          %s237 = sshll.u32 %s227, 4
          %s238 = int_to_ptr.vmem [resolvable:$true] %s237
          %240 = dma.vmem_to_hbm [thread:$0]  %s238, 128, %s235, %s224
        $region36: #{tpu_custom_call.1} parent=31 // pred_fallthru
          _
      $region32: #{tpu_custom_call.1} parent=5 // pred_fallthru
        _
      %p241 = scmp.le.s32.totalorder 2, %s12
      // Predicated region
      $region37: #{tpu_custom_call.1} parent=5 // pred_check
        %p242 = pneg %p241
      $region38: #{tpu_custom_call.1} parent=5 // pred_check_branch
        %244 = sbr.rel (%p242) target = $region40
      $region39: #{tpu_custom_call.1} parent=5 // pred_region
        %s245 = ssub.s32 %s12, 2
        // Predicated region
        $region41: #{tpu_custom_call.1} parent=39 // pred_check
          %p246 = pneg %p109
        $region42: #{tpu_custom_call.1} parent=39 // pred_check_branch
          %248 = sbr.rel (%p246) target = $region44
        $region43: #{tpu_custom_call.1} parent=39 // pred_region
          %s249 = sand.u32 %s94, 1
          %s250 = scalar_lea.sflag [#allocation3], %s249
          %s251 = sand.u32 %s94, 1
          %s252 = smul.addr %s251, 8
          %s253 = scalar_lea.vmem [#allocation2], %s252
          %254 = dma.done %s250, 128
        $region44: #{tpu_custom_call.1} parent=39 // pred_fallthru
          _
      $region40: #{tpu_custom_call.1} parent=5 // pred_fallthru
        _
    $region6: #{tpu_custom_call.1} parent=1 // loop_footer
      %s16 = sadd.s32 1, %s12
    $region7: #{tpu_custom_call.1} parent=1 // loop_footer_branch
      %11 = sbr.rel target = $region3
    $region8: #{tpu_custom_call.1} parent=1 // loop_exit
      _
    %255 = vsyncpa [#allocation3], 1
    %s256 = scalar_lea.sflag [#allocation3], 1
    %257 = vsyncpa %s256, 1

</llo_original>
